<compile_context>
chip_gen: v7x
topology: tpu7x:2x2x1
jax: 0.10.0
libtpu: 0.0.40
codegen_flags: <defaults>
</compile_context>

<pallas_src>
import jax
import jax.numpy as jnp
from jax.experimental import pallas as pl
from jax.experimental.pallas import tpu as pltpu


def _round_up(x, m):
    return (x + m - 1) // m * m


def _vmem_cap_bytes():
    """Generation-aware VMEM budget: 75% of physical (96 MiB v5e/v6e, 48 MiB v7x)."""
    try:
        cap = int(pltpu.get_tpu_info().vmem_capacity_bytes)
    except Exception:
        cap = 64 << 20          # conservative fallback, safe on every generation
    return max(16 << 20, (cap * 3) // 4)


def _make_kernel(cp, gate_fold):
    """Build the row-tile kernel.

    cp        : lane width of one row block (pack * C)
    gate_fold : True  -> gate logits come from the extra matmul columns
                False -> gate computed as VPU multiply + XLU lane reduction

    Refs:
      x1_ref, x2_ref : (TM, cp)            input rows (input dtype)
      w1_ref, w2_ref : (cp, cp[+cp])       (block-diag) W^T [| gate block]
      p_ref          : (8, cp) f32 rows: scale1, bias1, scale2, bias2, ws1, ws2
      o_ref          : (TM, cp)            output rows
    """
    def kernel(x1_ref, x2_ref, w1_ref, w2_ref, p_ref, o_ref):
        x1 = x1_ref[...]
        x2 = x2_ref[...]

        # MXU matmuls in the input dtype (bf16-native when inputs are bf16),
        # f32 accumulation.
        mm1 = jnp.dot(x1, w1_ref[...], preferred_element_type=jnp.float32)
        mm2 = jnp.dot(x2, w2_ref[...], preferred_element_type=jnp.float32)

        h1 = jnp.tanh(mm1[:, :cp])
        h2 = jnp.tanh(mm2[:, :cp])

        s1 = p_ref[0:1, :]
        b1 = p_ref[1:2, :]
        s2 = p_ref[2:3, :]
        b2 = p_ref[3:4, :]
        h1t = s1 * h1 + b1
        h2t = s2 * h2 + b2

        if gate_fold:
            # Gate logits folded into the extra matmul columns, already
            # replicated across each packed chunk's lanes.
            z = jax.nn.sigmoid(mm1[:, cp:] + mm2[:, cp:])
        else:
            # sigmoid(hidden_sigmoid(cat(x1,x2))) == sigmoid(x1.ws1 + x2.ws2)
            ws1 = p_ref[4:5, :]
            ws2 = p_ref[5:6, :]
            z_logit = (jnp.sum(x1.astype(jnp.float32) * ws1, axis=-1, keepdims=True)
                       + jnp.sum(x2.astype(jnp.float32) * ws2, axis=-1, keepdims=True))
            z = jax.nn.sigmoid(z_logit)          # (TM, 1) broadcasts over cp

        # z*h1t + (1-z)*h2t, with one fewer multiply.
        o_ref[...] = (h2t + z * (h1t - h2t)).astype(o_ref.dtype)

    return kernel


def gated_multimodal_layer(x1, x2, params):
    """x1, x2: (B, C, T, Q).  Returns (B, C, T, Q).  Matches the PyTorch module."""
    B, C, T, Q = x1.shape
    assert x2.shape == x1.shape
    N = B * T * Q
    dtype = x1.dtype
    itemsize = jnp.dtype(dtype).itemsize

    # .view(B, T, Q, C) on NCHW-contiguous memory == row-major reshape (no copy).
    x1f = x1.reshape(N, C)
    x2f = x2.reshape(N, C)

    w1_t = params["w1"].T.astype(jnp.float32)       # (C, C); y = x @ W^T
    w2_t = params["w2"].T.astype(jnp.float32)
    ws = params["ws"].astype(jnp.float32).reshape(-1)
    ws1, ws2 = ws[:C], ws[C:]

    # ---- lane packing: `pack` logical rows side-by-side on the 128 lanes ----
    pack = 128 // C if (C < 128 and 128 % C == 0) else 1
    while pack > 1 and N % pack:
        pack //= 2
    cp = pack * C
    np_rows = N // pack
    gate_fold = pack > 1

    f32 = lambda v: v.astype(jnp.float32)
    if gate_fold:
        # Pure row-major re-view: (N, C) -> (N/pack, pack*C).  No data movement.
        x1p = x1f.reshape(np_rows, cp)
        x2p = x2f.reshape(np_rows, cp)
        eye = jnp.eye(pack, dtype=jnp.float32)
        w1b = jnp.kron(eye, w1_t)                               # block-diag (cp, cp)
        w2b = jnp.kron(eye, w2_t)
        # Gate block: block (j,j)[a,b] = ws[a]  ->  per-chunk logit, replicated
        # across the chunk's C output lanes.
        g1 = jnp.kron(eye, jnp.broadcast_to(ws1[:, None], (C, C)))
        g2 = jnp.kron(eye, jnp.broadcast_to(ws2[:, None], (C, C)))
        w1e = jnp.concatenate([w1b, g1], axis=1).astype(dtype)  # (cp, 2cp)
        w2e = jnp.concatenate([w2b, g2], axis=1).astype(dtype)
        wcols = 2 * cp
        tile_v = lambda v: jnp.tile(f32(v), pack)
        rows = [tile_v(params["scale1"]), tile_v(params["bias1"]),
                tile_v(params["scale2"]), tile_v(params["bias2"]),
                jnp.tile(ws1, pack), jnp.tile(ws2, pack)]
    else:
        x1p, x2p = x1f, x2f
        w1e = w1_t.astype(dtype)
        w2e = w2_t.astype(dtype)
        wcols = C
        rows = [f32(params["scale1"]), f32(params["bias1"]),
                f32(params["scale2"]), f32(params["bias2"]), ws1, ws2]

    prow = jnp.pad(jnp.stack(rows, axis=0), ((0, 2), (0, 0)))   # (8, cp) f32

    # ---- row tiling: ~2 MiB per input tile, >= 2 grid steps for big problems ----
    tile_rows = (2 << 20) // max(cp * itemsize, 1)
    tile_rows = int(max(8, min(tile_rows, 8192, _round_up(np_rows, 8))))
    if np_rows >= 2048:
        # v7x has 2 TensorCores; keep the 'parallel' grid at >= 2 steps.
        tile_rows = min(tile_rows, pl.cdiv(np_rows, 2))
    tile_rows = max(8, (tile_rows // 8) * 8)

    vmem_cap = _vmem_cap_bytes()

    def vmem_est(tr):
        return (2 * 2 * cp * wcols * itemsize          # w1e, w2e (<= double-buffered)
                + 2 * 3 * tr * cp * itemsize           # x1, x2, out tiles (dbl-buf)
                + 2 * 8 * cp * 4                       # packed params
                + (2 << 20))                           # compiler headroom

    while tile_rows > 8 and vmem_est(tile_rows) > vmem_cap:
        tile_rows = max(8, ((tile_rows // 2) // 8) * 8)

    grid = (pl.cdiv(np_rows, tile_rows),)
    vmem_limit = int(min(vmem_cap, max(32 << 20, 2 * vmem_est(tile_rows))))

    kernel = _make_kernel(cp, gate_fold)

    def _run(single_buffer_resident):
        # Grid-invariant operands: single-buffer them when supported.
        res_kw = dict(pipeline_mode=pl.Buffered(1)) if single_buffer_resident else {}
        in_specs = [
            pl.BlockSpec((tile_rows, cp), lambda i: (i, 0)),           # x1 rows
            pl.BlockSpec((tile_rows, cp), lambda i: (i, 0)),           # x2 rows
            pl.BlockSpec((cp, wcols), lambda i: (0, 0), **res_kw),     # W1 ext (resident)
            pl.BlockSpec((cp, wcols), lambda i: (0, 0), **res_kw),     # W2 ext (resident)
            pl.BlockSpec((8, cp), lambda i: (0, 0), **res_kw),         # packed params
        ]
        return pl.pallas_call(
            kernel,
            out_shape=jax.ShapeDtypeStruct((np_rows, cp), dtype),
            grid_spec=pltpu.PrefetchScalarGridSpec(
                num_scalar_prefetch=0,
                grid=grid,
                in_specs=in_specs,
                out_specs=pl.BlockSpec((tile_rows, cp), lambda i: (i, 0)),
            ),
            compiler_params=pltpu.CompilerParams(
                dimension_semantics=("parallel",),
                vmem_limit_bytes=vmem_limit),
        )(x1p, x2p, w1e, w2e, prow)

    try:
        out = _run(True)
    except Exception:
        # pipeline_mode / Buffered(1) not supported on this JAX build; the
        # default double-buffered resident operands are semantically identical.
        out = _run(False)

    # (np_rows, cp) row-major == (N, C) row-major; final view back to NCHW.
    return out.reshape(B, C, T, Q)


def init_params(key, size_in1, size_in2, size_out, dtype=jnp.float32):
    """Deterministic parameter init matching the module's shapes."""
    k1, k2, k3 = jax.random.split(key, 3)
    lim1 = 1.0 / jnp.sqrt(size_in1)
    lim2 = 1.0 / jnp.sqrt(size_in2)
    lims = 1.0 / jnp.sqrt(2 * size_out)
    return {
        "w1": jax.random.uniform(k1, (size_out, size_in1), dtype, -lim1, lim1),
        "w2": jax.random.uniform(k2, (size_out, size_in2), dtype, -lim2, lim2),
        "ws": jax.random.uniform(k3, (1, 2 * size_out), dtype, -lims, lims),
        "scale1": jnp.ones((size_out,), dtype),
        "bias1": jnp.zeros((size_out,), dtype),
        "scale2": jnp.ones((size_out,), dtype),
        "bias2": jnp.zeros((size_out,), dtype),
    }


def gmu_reference(x1, x2, params):
    """Pure-JAX reference mirroring the PyTorch forward exactly (f32 math)."""
    B, C, T, Q = x1.shape
    x1v = x1.reshape(B, T, Q, C).astype(jnp.float32)
    x2v = x2.reshape(B, T, Q, C).astype(jnp.float32)
    h1 = jnp.tanh(x1v @ params["w1"].T.astype(jnp.float32))
    h2 = jnp.tanh(x2v @ params["w2"].T.astype(jnp.float32))
    h1t = params["scale1"] * h1 + params["bias1"]
    h2t = params["scale2"] * h2 + params["bias2"]
    x = jnp.concatenate((x1v, x2v), axis=-1)
    z = jax.nn.sigmoid(jnp.sum(x * params["ws"][0].astype(jnp.float32),
                               axis=-1, keepdims=True))
    out = z * h1t + (1 - z) * h2t
    return out.reshape(B, C, T, Q)


if __name__ == "__main__":
    key = jax.random.PRNGKey(0)

    def check(B, C, T, Q, dtype, atol, rtol, k):
        kx1, kx2, kp = jax.random.split(k, 3)
        x1 = jax.random.normal(kx1, (B, C, T, Q), jnp.float32).astype(dtype)
        x2 = jax.random.normal(kx2, (B, C, T, Q), jnp.float32).astype(dtype)
        params = init_params(kp, C, C, C)           # forward() needs in1==in2==out==C
        out = jax.block_until_ready(gated_multimodal_layer(x1, x2, params))
        ref = gmu_reference(x1, x2, params)
        assert out.shape == (B, C, T, Q) and out.dtype == dtype
        assert jnp.allclose(out.astype(jnp.float32), ref, atol=atol, rtol=rtol), \
            f"mismatch at shape={(B, C, T, Q)} dtype={dtype}"

    k1, k2, k3 = jax.random.split(key, 3)
    # C=32 -> lane-packed path (4 logical rows per 128-lane row, gate in the MXU)
    check(2, 32, 8, 8, jnp.float32, 1e-4, 1e-4, k1)
    # bf16 I/O path (bf16 MXU operands, f32 accumulate & epilogue)
    check(2, 32, 8, 8, jnp.bfloat16, 1e-1, 5e-2, k2)
    # C=128 -> unpacked lane-dense path (gate via VPU multiply + XLU reduction)
    check(1, 128, 4, 4, jnp.float32, 2e-4, 2e-4, k3)

    print("KERNEL_OK")
</pallas_src>

<mosaic_0001>
module attributes {stable_mosaic.version = 11 : i64} {
  func.func @kernel(%arg0: i32, %arg1: memref<32x128xf32, #tpu.memory_space<vmem>>, %arg2: memref<32x128xf32, #tpu.memory_space<vmem>>, %arg3: memref<128x256xf32, #tpu.memory_space<vmem>>, %arg4: memref<128x256xf32, #tpu.memory_space<vmem>>, %arg5: memref<8x128xf32, #tpu.memory_space<vmem>>, %arg6: memref<32x128xf32, #tpu.memory_space<vmem>>) attributes {dimension_semantics = [#tpu.dimension_semantics<parallel>], iteration_bounds = array<i64: 1>, scalar_prefetch = 0 : i64, scratch_operands = 0 : i64, tpu.core_type = #tpu.core_type<tc>, window_params = [{transform_indices = @transform_0, window_bounds = array<i64: 32, 128>}, {transform_indices = @transform_1, window_bounds = array<i64: 32, 128>}, {pipeline_mode = #tpu.pipeline_mode<synchronous>, transform_indices = @transform_2, window_bounds = array<i64: 128, 256>}, {pipeline_mode = #tpu.pipeline_mode<synchronous>, transform_indices = @transform_3, window_bounds = array<i64: 128, 256>}, {pipeline_mode = #tpu.pipeline_mode<synchronous>, transform_indices = @transform_4, window_bounds = array<i64: 8, 128>}, {transform_indices = @transform_5, window_bounds = array<i64: 32, 128>}]} {
    %c0 = arith.constant 0 : index
    %c0_0 = arith.constant 0 : index
    %0 = vector.load %arg1[%c0, %c0_0] : memref<32x128xf32, #tpu.memory_space<vmem>>, vector<32x128xf32>
    %c0_1 = arith.constant 0 : index
    %c0_2 = arith.constant 0 : index
    %1 = vector.load %arg2[%c0_1, %c0_2] : memref<32x128xf32, #tpu.memory_space<vmem>>, vector<32x128xf32>
    %c0_3 = arith.constant 0 : index
    %c0_4 = arith.constant 0 : index
    %2 = vector.load %arg3[%c0_3, %c0_4] : memref<128x256xf32, #tpu.memory_space<vmem>>, vector<128x256xf32>
    %cst = arith.constant dense<0.000000e+00> : vector<32x256xf32>
    %3 = tpu.matmul %0, %2, %cst {dimension_numbers = #tpu.dot_dimension_numbers<[1], [0], [0], [1], [0, 0, 1, 1], [], []>} : vector<32x128xf32>, vector<128x256xf32>, vector<32x256xf32> -> vector<32x256xf32>
    %c0_5 = arith.constant 0 : index
    %c0_6 = arith.constant 0 : index
    %4 = vector.load %arg4[%c0_5, %c0_6] : memref<128x256xf32, #tpu.memory_space<vmem>>, vector<128x256xf32>
    %cst_7 = arith.constant dense<0.000000e+00> : vector<32x256xf32>
    %5 = tpu.matmul %1, %4, %cst_7 {dimension_numbers = #tpu.dot_dimension_numbers<[1], [0], [0], [1], [0, 0, 1, 1], [], []>} : vector<32x128xf32>, vector<128x256xf32>, vector<32x256xf32> -> vector<32x256xf32>
    %6 = vector.extract_strided_slice %3 {offsets = [0, 0], sizes = [32, 128], strides = [1, 1]} : vector<32x256xf32> to vector<32x128xf32>
    %7 = math.tanh %6 : vector<32x128xf32>
    %8 = vector.extract_strided_slice %5 {offsets = [0, 0], sizes = [32, 128], strides = [1, 1]} : vector<32x256xf32> to vector<32x128xf32>
    %9 = math.tanh %8 : vector<32x128xf32>
    %c0_8 = arith.constant 0 : index
    %c0_9 = arith.constant 0 : index
    %10 = vector.load %arg5[%c0_8, %c0_9] : memref<8x128xf32, #tpu.memory_space<vmem>>, vector<1x128xf32>
    %c1 = arith.constant 1 : index
    %c0_10 = arith.constant 0 : index
    %11 = vector.load %arg5[%c1, %c0_10] : memref<8x128xf32, #tpu.memory_space<vmem>>, vector<1x128xf32>
    %c2 = arith.constant 2 : index
    %c0_11 = arith.constant 0 : index
    %12 = vector.load %arg5[%c2, %c0_11] : memref<8x128xf32, #tpu.memory_space<vmem>>, vector<1x128xf32>
    %c3 = arith.constant 3 : index
    %c0_12 = arith.constant 0 : index
    %13 = vector.load %arg5[%c3, %c0_12] : memref<8x128xf32, #tpu.memory_space<vmem>>, vector<1x128xf32>
    %14 = vector.broadcast %10 : vector<1x128xf32> to vector<32x128xf32>
    %15 = arith.mulf %14, %7 : vector<32x128xf32>
    %16 = vector.broadcast %11 : vector<1x128xf32> to vector<32x128xf32>
    %17 = arith.addf %15, %16 : vector<32x128xf32>
    %18 = vector.broadcast %12 : vector<1x128xf32> to vector<32x128xf32>
    %19 = arith.mulf %18, %9 : vector<32x128xf32>
    %20 = vector.broadcast %13 : vector<1x128xf32> to vector<32x128xf32>
    %21 = arith.addf %19, %20 : vector<32x128xf32>
    %22 = vector.extract_strided_slice %3 {offsets = [0, 128], sizes = [32, 128], strides = [1, 1]} : vector<32x256xf32> to vector<32x128xf32>
    %23 = vector.extract_strided_slice %5 {offsets = [0, 128], sizes = [32, 128], strides = [1, 1]} : vector<32x256xf32> to vector<32x128xf32>
    %24 = arith.addf %22, %23 : vector<32x128xf32>
    %25 = arith.negf %24 : vector<32x128xf32>
    %26 = math.exp %25 : vector<32x128xf32>
    %cst_13 = arith.constant 1.000000e+00 : f32
    %27 = vector.broadcast %cst_13 : f32 to vector<32x128xf32>
    %28 = arith.addf %27, %26 : vector<32x128xf32>
    %29 = arith.divf %27, %28 : vector<32x128xf32>
    %30 = arith.subf %17, %21 : vector<32x128xf32>
    %31 = arith.mulf %29, %30 : vector<32x128xf32>
    %32 = arith.addf %21, %31 : vector<32x128xf32>
    %c0_14 = arith.constant 0 : index
    %c0_15 = arith.constant 0 : index
    %33 = vector.load %arg6[%c0_14, %c0_15] : memref<32x128xf32, #tpu.memory_space<vmem>>, vector<32x128xf32>
    tpu.vector_store %arg6[%c0_14, %c0_15], %32 {strides = array<i32>} : memref<32x128xf32, #tpu.memory_space<vmem>>, vector<32x128xf32>,
    return
  }
  func.func @transform_0(%arg0: i32) -> (i32, i32) {
    %c0_i32 = arith.constant 0 : i32
    %c0_i32_0 = arith.constant 0 : i32
    return %arg0, %c0_i32 : i32, i32
  }
  func.func @transform_1(%arg0: i32) -> (i32, i32) {
    %c0_i32 = arith.constant 0 : i32
    %c0_i32_0 = arith.constant 0 : i32
    return %arg0, %c0_i32 : i32, i32
  }
  func.func @transform_2(%arg0: i32) -> (i32, i32) {
    %c0_i32 = arith.constant 0 : i32
    %c0_i32_0 = arith.constant 0 : i32
    %c0_i32_1 = arith.constant 0 : i32
    return %c0_i32, %c0_i32_0 : i32, i32
  }
  func.func @transform_3(%arg0: i32) -> (i32, i32) {
    %c0_i32 = arith.constant 0 : i32
    %c0_i32_0 = arith.constant 0 : i32
    %c0_i32_1 = arith.constant 0 : i32
    return %c0_i32, %c0_i32_0 : i32, i32
  }
  func.func @transform_4(%arg0: i32) -> (i32, i32) {
    %c0_i32 = arith.constant 0 : i32
    %c0_i32_0 = arith.constant 0 : i32
    %c0_i32_1 = arith.constant 0 : i32
    return %c0_i32, %c0_i32_0 : i32, i32
  }
  func.func @transform_5(%arg0: i32) -> (i32, i32) {
    %c0_i32 = arith.constant 0 : i32
    %c0_i32_0 = arith.constant 0 : i32
    return %arg0, %c0_i32 : i32, i32
  }
}

module attributes {stable_mosaic.version = 11 : i64} {
  func.func @kernel(%arg0: i32, %arg1: memref<32x128xf32, #tpu.memory_space<vmem>>, %arg2: memref<32x128xf32, #tpu.memory_space<vmem>>, %arg3: memref<128x256xf32, #tpu.memory_space<vmem>>, %arg4: memref<128x256xf32, #tpu.memory_space<vmem>>, %arg5: memref<8x128xf32, #tpu.memory_space<vmem>>, %arg6: memref<32x128xf32, #tpu.memory_space<vmem>>) attributes {dimension_semantics = [#tpu.dimension_semantics<parallel>], iteration_bounds = array<i64: 1>, scalar_prefetch = 0 : i64, scratch_operands = 0 : i64, tpu.core_type = #tpu.core_type<tc>, window_params = [{transform_indices = @transform_0, window_bounds = array<i64: 32, 128>}, {transform_indices = @transform_1, window_bounds = array<i64: 32, 128>}, {pipeline_mode = #tpu.pipeline_mode<synchronous>, transform_indices = @transform_2, window_bounds = array<i64: 128, 256>}, {pipeline_mode = #tpu.pipeline_mode<synchronous>, transform_indices = @transform_3, window_bounds = array<i64: 128, 256>}, {pipeline_mode = #tpu.pipeline_mode<synchronous>, transform_indices = @transform_4, window_bounds = array<i64: 8, 128>}, {transform_indices = @transform_5, window_bounds = array<i64: 32, 128>}]} {
    %c0 = arith.constant 0 : index
    %c0_0 = arith.constant 0 : index
    %0 = vector.load %arg1[%c0, %c0_0] : memref<32x128xf32, #tpu.memory_space<vmem>>, vector<32x128xf32>
    %c0_1 = arith.constant 0 : index
    %c0_2 = arith.constant 0 : index
    %1 = vector.load %arg2[%c0_1, %c0_2] : memref<32x128xf32, #tpu.memory_space<vmem>>, vector<32x128xf32>
    %c0_3 = arith.constant 0 : index
    %c0_4 = arith.constant 0 : index
    %2 = vector.load %arg3[%c0_3, %c0_4] : memref<128x256xf32, #tpu.memory_space<vmem>>, vector<128x256xf32>
    %cst = arith.constant dense<0.000000e+00> : vector<32x256xf32>
    %3 = tpu.matmul %0, %2, %cst {dimension_numbers = #tpu.dot_dimension_numbers<[1], [0], [0], [1], [0, 0, 1, 1], [], []>} : vector<32x128xf32>, vector<128x256xf32>, vector<32x256xf32> -> vector<32x256xf32>
    %c0_5 = arith.constant 0 : index
    %c0_6 = arith.constant 0 : index
    %4 = vector.load %arg4[%c0_5, %c0_6] : memref<128x256xf32, #tpu.memory_space<vmem>>, vector<128x256xf32>
    %cst_7 = arith.constant dense<0.000000e+00> : vector<32x256xf32>
    %5 = tpu.matmul %1, %4, %cst_7 {dimension_numbers = #tpu.dot_dimension_numbers<[1], [0], [0], [1], [0, 0, 1, 1], [], []>} : vector<32x128xf32>, vector<128x256xf32>, vector<32x256xf32> -> vector<32x256xf32>
    %6 = vector.extract_strided_slice %3 {offsets = [0, 0], sizes = [32, 128], strides = [1, 1]} : vector<32x256xf32> to vector<32x128xf32>
    %7 = math.tanh %6 : vector<32x128xf32>
    %8 = vector.extract_strided_slice %5 {offsets = [0, 0], sizes = [32, 128], strides = [1, 1]} : vector<32x256xf32> to vector<32x128xf32>
    %9 = math.tanh %8 : vector<32x128xf32>
    %c0_8 = arith.constant 0 : index
    %c0_9 = arith.constant 0 : index
    %10 = vector.load %arg5[%c0_8, %c0_9] : memref<8x128xf32, #tpu.memory_space<vmem>>, vector<1x128xf32>
    %c1 = arith.constant 1 : index
    %c0_10 = arith.constant 0 : index
    %11 = vector.load %arg5[%c1, %c0_10] : memref<8x128xf32, #tpu.memory_space<vmem>>, vector<1x128xf32>
    %c2 = arith.constant 2 : index
    %c0_11 = arith.constant 0 : index
    %12 = vector.load %arg5[%c2, %c0_11] : memref<8x128xf32, #tpu.memory_space<vmem>>, vector<1x128xf32>
    %c3 = arith.constant 3 : index
    %c0_12 = arith.constant 0 : index
    %13 = vector.load %arg5[%c3, %c0_12] : memref<8x128xf32, #tpu.memory_space<vmem>>, vector<1x128xf32>
    %14 = vector.broadcast %10 : vector<1x128xf32> to vector<32x128xf32>
    %15 = arith.mulf %14, %7 : vector<32x128xf32>
    %16 = vector.broadcast %11 : vector<1x128xf32> to vector<32x128xf32>
    %17 = arith.addf %15, %16 : vector<32x128xf32>
    %18 = vector.broadcast %12 : vector<1x128xf32> to vector<32x128xf32>
    %19 = arith.mulf %18, %9 : vector<32x128xf32>
    %20 = vector.broadcast %13 : vector<1x128xf32> to vector<32x128xf32>
    %21 = arith.addf %19, %20 : vector<32x128xf32>
    %22 = vector.extract_strided_slice %3 {offsets = [0, 128], sizes = [32, 128], strides = [1, 1]} : vector<32x256xf32> to vector<32x128xf32>
    %23 = vector.extract_strided_slice %5 {offsets = [0, 128], sizes = [32, 128], strides = [1, 1]} : vector<32x256xf32> to vector<32x128xf32>
    %24 = arith.addf %22, %23 : vector<32x128xf32>
    %25 = arith.negf %24 : vector<32x128xf32>
    %26 = math.exp %25 : vector<32x128xf32>
    %cst_13 = arith.constant 1.000000e+00 : f32
    %27 = vector.broadcast %cst_13 : f32 to vector<32x128xf32>
    %28 = arith.addf %27, %26 : vector<32x128xf32>
    %29 = arith.divf %27, %28 : vector<32x128xf32>
    %30 = arith.subf %17, %21 : vector<32x128xf32>
    %31 = arith.mulf %29, %30 : vector<32x128xf32>
    %32 = arith.addf %21, %31 : vector<32x128xf32>
    %c0_14 = arith.constant 0 : index
    %c0_15 = arith.constant 0 : index
    %33 = vector.load %arg6[%c0_14, %c0_15] : memref<32x128xf32, #tpu.memory_space<vmem>>, vector<32x128xf32>
    tpu.vector_store %arg6[%c0_14, %c0_15], %32 {strides = array<i32>} : memref<32x128xf32, #tpu.memory_space<vmem>>, vector<32x128xf32>,
    return
  }
  func.func @transform_0(%arg0: i32) -> (i32, i32) {
    %c0_i32 = arith.constant 0 : i32
    %c0_i32_0 = arith.constant 0 : i32
    return %arg0, %c0_i32 : i32, i32
  }
  func.func @transform_1(%arg0: i32) -> (i32, i32) {
    %c0_i32 = arith.constant 0 : i32
    %c0_i32_0 = arith.constant 0 : i32
    return %arg0, %c0_i32 : i32, i32
  }
  func.func @transform_2(%arg0: i32) -> (i32, i32) {
    %c0_i32 = arith.constant 0 : i32
    %c0_i32_0 = arith.constant 0 : i32
    %c0_i32_1 = arith.constant 0 : i32
    return %c0_i32, %c0_i32_0 : i32, i32
  }
  func.func @transform_3(%arg0: i32) -> (i32, i32) {
    %c0_i32 = arith.constant 0 : i32
    %c0_i32_0 = arith.constant 0 : i32
    %c0_i32_1 = arith.constant 0 : i32
    return %c0_i32, %c0_i32_0 : i32, i32
  }
  func.func @transform_4(%arg0: i32) -> (i32, i32) {
    %c0_i32 = arith.constant 0 : i32
    %c0_i32_0 = arith.constant 0 : i32
    %c0_i32_1 = arith.constant 0 : i32
    return %c0_i32, %c0_i32_0 : i32, i32
  }
  func.func @transform_5(%arg0: i32) -> (i32, i32) {
    %c0_i32 = arith.constant 0 : i32
    %c0_i32_0 = arith.constant 0 : i32
    return %arg0, %c0_i32 : i32, i32
  }
}

</mosaic_0001>

<llo_original>
// kernel: tpu_custom_call.1
$region0: #{tpu_custom_call.1}
  #allocation0 [shape = 'u32[]', space=smem, size = 0x4, offset = 0x4, fixed_abs, tag = 'smem constant byte address 0x4 - core index']
  #allocation1 [shape = 'u32[144,128]{1,0:T(1,128)}', space=vmem, size = 0x12000, scoped, tag = 'internal scratch']
  %s0 = inlined_call_operand.hbm [shape: f32[32,128], index: 0, kind: input, shape index: {}]
  %s1 = inlined_call_operand.hbm [shape: f32[32,128], index: 1, kind: input, shape index: {}]
  %s2 = inlined_call_operand.hbm [shape: f32[128,256], index: 2, kind: input, shape index: {}]
  %s3 = inlined_call_operand.hbm [shape: f32[128,256], index: 3, kind: input, shape index: {}]
  %s4 = inlined_call_operand.vmem [shape: f32[8,128], index: 4, kind: input, shape index: {}]
  %s5 = inlined_call_operand.hbm [shape: f32[32,128], index: 5, kind: output, shape index: {}]
  %s6 = sld [smem:[#allocation0]]
  $region46: #{tpu_custom_call.1} parent=0
    _
  %s8 = ssub.s32 1, %s6
  %s9 = scalar_select 0, %s8, %s6
  $region1: #{tpu_custom_call.1} parent=0
    #allocation2 [shape = 'u8[16384]{0}', space=vmem, size = 0x4000, scoped, tag = 'input window, operand 0, single buffered']
    #allocation3 [shape = 's32[1]{0}', space=sflag, size = 0x4, scoped, tag = 'scoped memory for tpu_custom_call.1']
    #allocation4 [shape = 's32[1]{0}', space=sflag, size = 0x4, scoped, tag = 'scoped memory for tpu_custom_call.1']
    #allocation5 [shape = 'u8[16384]{0}', space=vmem, size = 0x4000, scoped, tag = 'input window, operand 1, single buffered']
    #allocation6 [shape = 's32[1]{0}', space=sflag, size = 0x4, scoped, tag = 'scoped memory for tpu_custom_call.1']
    #allocation7 [shape = 'u8[131072]{0}', space=vmem, size = 0x20000, scoped, tag = 'input window, operand 2, single buffered']
    #allocation8 [shape = 'u8[131072]{0}', space=vmem, size = 0x20000, scoped, tag = 'input window, operand 3, single buffered']
    #allocation9 [shape = 's32[1]{0}', space=sflag, size = 0x4, scoped, tag = 'scoped memory for tpu_custom_call.1']
    #allocation10 [shape = 'u8[16384]{0}', space=vmem, size = 0x4000, scoped, tag = 'output window, operand 0, single buffered']
    %10 = vsyncpa [#allocation3], 0
    %11 = vsyncpa [#allocation6], 0
    %12 = vsyncpa [#allocation9], 0
    %13 = vsyncpa [#allocation4], 0
    // Predicated region
    $region2: #{tpu_custom_call.1} parent=1 // pred_check
      _
    $region3: #{tpu_custom_call.1} parent=1 // pred_check_branch
      %15 = sbr.rel (0) target = $region5
    $region4: #{tpu_custom_call.1} parent=1 // pred_region
      %s17 = ssub.s32 512, 512
      %18 = vsyncadd [#allocation3], %s17
      %s19 = sshll.u32 [#allocation2], 4
      %s20 = int_to_ptr.vmem [resolvable:$true] %s19
      %25 = dma.hbm_to_vmem [thread:$0]  %s0, 512, %s20, [#allocation3], 128, 128, 8
    $region5: #{tpu_custom_call.1} parent=1 // pred_fallthru
      _
    // Predicated region
    $region6: #{tpu_custom_call.1} parent=1 // pred_check
      _
    $region7: #{tpu_custom_call.1} parent=1 // pred_check_branch
      %27 = sbr.rel (0) target = $region9
    $region8: #{tpu_custom_call.1} parent=1 // pred_region
      %s29 = ssub.s32 512, 512
      %30 = vsyncadd [#allocation6], %s29
      %s31 = sshll.u32 [#allocation5], 4
      %s32 = int_to_ptr.vmem [resolvable:$true] %s31
      %37 = dma.hbm_to_vmem [thread:$0]  %s1, 512, %s32, [#allocation6], 128, 128, 8
    $region9: #{tpu_custom_call.1} parent=1 // pred_fallthru
      _
    // Predicated region
    $region10: #{tpu_custom_call.1} parent=1 // pred_check
      _
    $region11: #{tpu_custom_call.1} parent=1 // pred_check_branch
      %39 = sbr.rel (0) target = $region13
    $region12: #{tpu_custom_call.1} parent=1 // pred_region
      %s41 = ssub.s32 4096, 4096
      %42 = vsyncadd [#allocation6], %s41
      %s43 = sshll.u32 [#allocation7], 4
      %s44 = int_to_ptr.vmem [resolvable:$true] %s43
      %49 = dma.hbm_to_vmem [thread:$0]  %s2, 4096, %s44, [#allocation6], 256, 256, 16
    $region13: #{tpu_custom_call.1} parent=1 // pred_fallthru
      _
    // Predicated region
    $region14: #{tpu_custom_call.1} parent=1 // pred_check
      _
    $region15: #{tpu_custom_call.1} parent=1 // pred_check_branch
      %51 = sbr.rel (0) target = $region17
    $region16: #{tpu_custom_call.1} parent=1 // pred_region
      %s53 = ssub.s32 4096, 4096
      %54 = vsyncadd [#allocation9], %s53
      %s55 = sshll.u32 [#allocation8], 4
      %s56 = int_to_ptr.vmem [resolvable:$true] %s55
      %61 = dma.hbm_to_vmem [thread:$0]  %s3, 4096, %s56, [#allocation9], 256, 256, 16
    $region17: #{tpu_custom_call.1} parent=1 // pred_fallthru
      _
    // Predicated region
    $region18: #{tpu_custom_call.1} parent=1 // pred_check
      _
    $region19: #{tpu_custom_call.1} parent=1 // pred_check_branch
      %63 = sbr.rel (0) target = $region21
    $region20: #{tpu_custom_call.1} parent=1 // pred_region
      _
    $region21: #{tpu_custom_call.1} parent=1 // pred_fallthru
      _
    // Predicated region
    $region22: #{tpu_custom_call.1} parent=1 // pred_check
      _
    $region23: #{tpu_custom_call.1} parent=1 // pred_check_branch
      %65 = sbr.rel (0) target = $region25
    $region24: #{tpu_custom_call.1} parent=1 // pred_region
      %66 = dma.done [#allocation3], 512
    $region25: #{tpu_custom_call.1} parent=1 // pred_fallthru
      _
    // Predicated region
    $region26: #{tpu_custom_call.1} parent=1 // pred_check
      _
    $region27: #{tpu_custom_call.1} parent=1 // pred_check_branch
      %68 = sbr.rel (0) target = $region29
    $region28: #{tpu_custom_call.1} parent=1 // pred_region
      %69 = dma.done [#allocation6], 512
    $region29: #{tpu_custom_call.1} parent=1 // pred_fallthru
      _
    // Predicated region
    $region30: #{tpu_custom_call.1} parent=1 // pred_check
      _
    $region31: #{tpu_custom_call.1} parent=1 // pred_check_branch
      %71 = sbr.rel (0) target = $region33
    $region32: #{tpu_custom_call.1} parent=1 // pred_region
      %72 = dma.done [#allocation6], 4096
    $region33: #{tpu_custom_call.1} parent=1 // pred_fallthru
      _
    // Predicated region
    $region34: #{tpu_custom_call.1} parent=1 // pred_check
      _
    $region35: #{tpu_custom_call.1} parent=1 // pred_check_branch
      %74 = sbr.rel (0) target = $region37
    $region36: #{tpu_custom_call.1} parent=1 // pred_region
      %75 = dma.done [#allocation9], 4096
    $region37: #{tpu_custom_call.1} parent=1 // pred_fallthru
      _
    %v76 = vld [vmem:[#allocation2] sm:$0xff]
    %v77 = vld [vmem:[#allocation2 + $0x8] sm:$0xff]
    %v78 = vld [vmem:[#allocation2 + $0x10] sm:$0xff]
    %v79 = vld [vmem:[#allocation2 + $0x18] sm:$0xff]
    %v80 = vld [vmem:[#allocation5] sm:$0xff]
    %v81 = vld [vmem:[#allocation5 + $0x8] sm:$0xff]
    %v82 = vld [vmem:[#allocation5 + $0x10] sm:$0xff]
    %v83 = vld [vmem:[#allocation5 + $0x18] sm:$0xff]
    %v84 = vld [vmem:[#allocation7] sm:$0xff]
    %v85 = vld [vmem:[#allocation7 + $0x8] sm:$0xff]
    %v86 = vld [vmem:[#allocation7 + $0x10] sm:$0xff]
    %v87 = vld [vmem:[#allocation7 + $0x18] sm:$0xff]
    %v88 = vld [vmem:[#allocation7 + $0x20] sm:$0xff]
    %v89 = vld [vmem:[#allocation7 + $0x28] sm:$0xff]
    %v90 = vld [vmem:[#allocation7 + $0x30] sm:$0xff]
    %v91 = vld [vmem:[#allocation7 + $0x38] sm:$0xff]
    %v92 = vld [vmem:[#allocation7 + $0x40] sm:$0xff]
    %v93 = vld [vmem:[#allocation7 + $0x48] sm:$0xff]
    %v94 = vld [vmem:[#allocation7 + $0x50] sm:$0xff]
    %v95 = vld [vmem:[#allocation7 + $0x58] sm:$0xff]
    %v96 = vld [vmem:[#allocation7 + $0x60] sm:$0xff]
    %v97 = vld [vmem:[#allocation7 + $0x68] sm:$0xff]
    %v98 = vld [vmem:[#allocation7 + $0x70] sm:$0xff]
    %v99 = vld [vmem:[#allocation7 + $0x78] sm:$0xff]
    %v100 = vld [vmem:[#allocation7 + $0x80] sm:$0xff]
    %v101 = vld [vmem:[#allocation7 + $0x88] sm:$0xff]
    %v102 = vld [vmem:[#allocation7 + $0x90] sm:$0xff]
    %v103 = vld [vmem:[#allocation7 + $0x98] sm:$0xff]
    %v104 = vld [vmem:[#allocation7 + $0xa0] sm:$0xff]
    %v105 = vld [vmem:[#allocation7 + $0xa8] sm:$0xff]
    %v106 = vld [vmem:[#allocation7 + $0xb0] sm:$0xff]
    %v107 = vld [vmem:[#allocation7 + $0xb8] sm:$0xff]
    %v108 = vld [vmem:[#allocation7 + $0xc0] sm:$0xff]
    %v109 = vld [vmem:[#allocation7 + $0xc8] sm:$0xff]
    %v110 = vld [vmem:[#allocation7 + $0xd0] sm:$0xff]
    %v111 = vld [vmem:[#allocation7 + $0xd8] sm:$0xff]
    %v112 = vld [vmem:[#allocation7 + $0xe0] sm:$0xff]
    %v113 = vld [vmem:[#allocation7 + $0xe8] sm:$0xff]
    %v114 = vld [vmem:[#allocation7 + $0xf0] sm:$0xff]
    %v115 = vld [vmem:[#allocation7 + $0xf8] sm:$0xff]
    %116 = vmatprep.subr.mxu0 %v85
    %117 = vmatpush1.msra.mxu0 %v84
    %118 = vmatprep.subr.mxu0 %v87
    %119 = vmatpush1.msra.mxu0 %v86
    %120 = vmatprep.subr.mxu0 %v89
    %121 = vmatpush1.msra.mxu0 %v88
    %122 = vmatprep.subr.mxu0 %v91
    %123 = vmatpush1.msra.mxu0 %v90
    %124 = vmatprep.subr.mxu0 %v93
    %125 = vmatpush1.msra.mxu0 %v92
    %126 = vmatprep.subr.mxu0 %v95
    %127 = vmatpush1.msra.mxu0 %v94
    %128 = vmatprep.subr.mxu0 %v97
    %129 = vmatpush1.msra.mxu0 %v96
    %130 = vmatprep.subr.mxu0 %v99
    %131 = vmatpush1.msra.mxu0 %v98
    %132 = vmatprep.subr.mxu0 %v101
    %133 = vmatpush1.msra.mxu0 %v100
    %134 = vmatprep.subr.mxu0 %v103
    %135 = vmatpush1.msra.mxu0 %v102
    %136 = vmatprep.subr.mxu0 %v105
    %137 = vmatpush1.msra.mxu0 %v104
    %138 = vmatprep.subr.mxu0 %v107
    %139 = vmatpush1.msra.mxu0 %v106
    %140 = vmatprep.subr.mxu0 %v109
    %141 = vmatpush1.msra.mxu0 %v108
    %142 = vmatprep.subr.mxu0 %v111
    %143 = vmatpush1.msra.mxu0 %v110
    %144 = vmatprep.subr.mxu0 %v113
    %145 = vmatpush1.msra.mxu0 %v112
    %146 = vmatprep.subr.mxu0 %v115
    %147 = vmatpush1.msra.mxu0 %v114
    %148 = vmatprep.subr.mxu0 0.0
    %149 = vmatpush1.msra.mxu0 0.0
    %150 = vmatprep.subr.mxu0 0.0
    %151 = vmatpush1.msra.mxu0 0.0
    %152 = vmatprep.subr.mxu0 0.0
    %153 = vmatpush1.msra.mxu0 0.0
    %154 = vmatprep.subr.mxu0 0.0
    %155 = vmatpush1.msra.mxu0 0.0
    %156 = vmatprep.subr.mxu0 0.0
    %157 = vmatpush1.msra.mxu0 0.0
    %158 = vmatprep.subr.mxu0 0.0
    %159 = vmatpush1.msra.mxu0 0.0
    %160 = vmatprep.subr.mxu0 0.0
    %161 = vmatpush1.msra.mxu0 0.0
    %162 = vmatprep.subr.mxu0 0.0
    %163 = vmatpush1.msra.mxu0 0.0
    %164 = vmatprep.subr.mxu0 0.0
    %165 = vmatpush1.msra.mxu0 0.0
    %166 = vmatprep.subr.mxu0 0.0
    %167 = vmatpush1.msra.mxu0 0.0
    %168 = vmatprep.subr.mxu0 0.0
    %169 = vmatpush1.msra.mxu0 0.0
    %170 = vmatprep.subr.mxu0 0.0
    %171 = vmatpush1.msra.mxu0 0.0
    %172 = vmatprep.subr.mxu0 0.0
    %173 = vmatpush1.msra.mxu0 0.0
    %174 = vmatprep.subr.mxu0 0.0
    %175 = vmatpush1.msra.mxu0 0.0
    %176 = vmatprep.subr.mxu0 0.0
    %177 = vmatpush1.msra.mxu0 0.0
    %178 = vmatprep.subr.mxu0 0.0
    %179 = vmatpush1.msra.mxu0 0.0
    %180 = vmatprep.mubr.f32.mxu0 0.0
    %181 = vmatmul.mubr.f32.gmra.mrb[0].mxu0 %v76
    %v182 = vpop.f32.mrb[0].mxu0
    %v183 = vadd.f32 0.0, %v182
    %v184 = vpop.f32.mrb[0].mxu0
    %v185 = vadd.f32 0.0, %v184
    %186 = vmatprep.mubr.f32.mxu0 0.0
    %187 = vmatmul.mubr.f32.gmra.mrb[0].mxu0 %v77
    %v188 = vpop.f32.mrb[0].mxu0
    %v189 = vadd.f32 0.0, %v188
    %v190 = vpop.f32.mrb[0].mxu0
    %v191 = vadd.f32 0.0, %v190
    %192 = vmatprep.mubr.f32.mxu0 0.0
    %193 = vmatmul.mubr.f32.gmra.mrb[0].mxu0 %v78
    %v194 = vpop.f32.mrb[0].mxu0
    %v195 = vadd.f32 0.0, %v194
    %v196 = vpop.f32.mrb[0].mxu0
    %v197 = vadd.f32 0.0, %v196
    %198 = vmatprep.mubr.f32.mxu0 0.0
    %199 = vmatmul.mubr.f32.gmra.mrb[0].mxu0 %v79
    %v200 = vpop.f32.mrb[0].mxu0
    %v201 = vadd.f32 0.0, %v200
    %v202 = vpop.f32.mrb[0].mxu0
    %v203 = vadd.f32 0.0, %v202
    %204 = vdwg.mxu0
    %v205 = vld [vmem:[#allocation8] sm:$0xff]
    %v206 = vld [vmem:[#allocation8 + $0x8] sm:$0xff]
    %v207 = vld [vmem:[#allocation8 + $0x10] sm:$0xff]
    %v208 = vld [vmem:[#allocation8 + $0x18] sm:$0xff]
    %v209 = vld [vmem:[#allocation8 + $0x20] sm:$0xff]
    %v210 = vld [vmem:[#allocation8 + $0x28] sm:$0xff]
    %v211 = vld [vmem:[#allocation8 + $0x30] sm:$0xff]
    %v212 = vld [vmem:[#allocation8 + $0x38] sm:$0xff]
    %v213 = vld [vmem:[#allocation8 + $0x40] sm:$0xff]
    %v214 = vld [vmem:[#allocation8 + $0x48] sm:$0xff]
    %v215 = vld [vmem:[#allocation8 + $0x50] sm:$0xff]
    %v216 = vld [vmem:[#allocation8 + $0x58] sm:$0xff]
    %v217 = vld [vmem:[#allocation8 + $0x60] sm:$0xff]
    %v218 = vld [vmem:[#allocation8 + $0x68] sm:$0xff]
    %v219 = vld [vmem:[#allocation8 + $0x70] sm:$0xff]
    %v220 = vld [vmem:[#allocation8 + $0x78] sm:$0xff]
    %v221 = vld [vmem:[#allocation8 + $0x80] sm:$0xff]
    %v222 = vld [vmem:[#allocation8 + $0x88] sm:$0xff]
    %v223 = vld [vmem:[#allocation8 + $0x90] sm:$0xff]
    %v224 = vld [vmem:[#allocation8 + $0x98] sm:$0xff]
    %v225 = vld [vmem:[#allocation8 + $0xa0] sm:$0xff]
    %v226 = vld [vmem:[#allocation8 + $0xa8] sm:$0xff]
    %v227 = vld [vmem:[#allocation8 + $0xb0] sm:$0xff]
    %v228 = vld [vmem:[#allocation8 + $0xb8] sm:$0xff]
    %v229 = vld [vmem:[#allocation8 + $0xc0] sm:$0xff]
    %v230 = vld [vmem:[#allocation8 + $0xc8] sm:$0xff]
    %v231 = vld [vmem:[#allocation8 + $0xd0] sm:$0xff]
    %v232 = vld [vmem:[#allocation8 + $0xd8] sm:$0xff]
    %v233 = vld [vmem:[#allocation8 + $0xe0] sm:$0xff]
    %v234 = vld [vmem:[#allocation8 + $0xe8] sm:$0xff]
    %v235 = vld [vmem:[#allocation8 + $0xf0] sm:$0xff]
    %v236 = vld [vmem:[#allocation8 + $0xf8] sm:$0xff]
    %237 = vmatprep.subr.mxu0 %v206
    %238 = vmatpush1.msra.mxu0 %v205
    %239 = vmatprep.subr.mxu0 %v208
    %240 = vmatpush1.msra.mxu0 %v207
    %241 = vmatprep.subr.mxu0 %v210
    %242 = vmatpush1.msra.mxu0 %v209
    %243 = vmatprep.subr.mxu0 %v212
    %244 = vmatpush1.msra.mxu0 %v211
    %245 = vmatprep.subr.mxu0 %v214
    %246 = vmatpush1.msra.mxu0 %v213
    %247 = vmatprep.subr.mxu0 %v216
    %248 = vmatpush1.msra.mxu0 %v215
    %249 = vmatprep.subr.mxu0 %v218
    %250 = vmatpush1.msra.mxu0 %v217
    %251 = vmatprep.subr.mxu0 %v220
    %252 = vmatpush1.msra.mxu0 %v219
    %253 = vmatprep.subr.mxu0 %v222
    %254 = vmatpush1.msra.mxu0 %v221
    %255 = vmatprep.subr.mxu0 %v224
    %256 = vmatpush1.msra.mxu0 %v223
    %257 = vmatprep.subr.mxu0 %v226
    %258 = vmatpush1.msra.mxu0 %v225
    %259 = vmatprep.subr.mxu0 %v228
    %260 = vmatpush1.msra.mxu0 %v227
    %261 = vmatprep.subr.mxu0 %v230
    %262 = vmatpush1.msra.mxu0 %v229
    %263 = vmatprep.subr.mxu0 %v232
    %264 = vmatpush1.msra.mxu0 %v231
    %265 = vmatprep.subr.mxu0 %v234
    %266 = vmatpush1.msra.mxu0 %v233
    %267 = vmatprep.subr.mxu0 %v236
    %268 = vmatpush1.msra.mxu0 %v235
    %269 = vmatprep.subr.mxu0 0.0
    %270 = vmatpush1.msra.mxu0 0.0
    %271 = vmatprep.subr.mxu0 0.0
    %272 = vmatpush1.msra.mxu0 0.0
    %273 = vmatprep.subr.mxu0 0.0
    %274 = vmatpush1.msra.mxu0 0.0
    %275 = vmatprep.subr.mxu0 0.0
    %276 = vmatpush1.msra.mxu0 0.0
    %277 = vmatprep.subr.mxu0 0.0
    %278 = vmatpush1.msra.mxu0 0.0
    %279 = vmatprep.subr.mxu0 0.0
    %280 = vmatpush1.msra.mxu0 0.0
    %281 = vmatprep.subr.mxu0 0.0
    %282 = vmatpush1.msra.mxu0 0.0
    %283 = vmatprep.subr.mxu0 0.0
    %284 = vmatpush1.msra.mxu0 0.0
    %285 = vmatprep.subr.mxu0 0.0
    %286 = vmatpush1.msra.mxu0 0.0
    %287 = vmatprep.subr.mxu0 0.0
    %288 = vmatpush1.msra.mxu0 0.0
    %289 = vmatprep.subr.mxu0 0.0
    %290 = vmatpush1.msra.mxu0 0.0
    %291 = vmatprep.subr.mxu0 0.0
    %292 = vmatpush1.msra.mxu0 0.0
    %293 = vmatprep.subr.mxu0 0.0
    %294 = vmatpush1.msra.mxu0 0.0
    %295 = vmatprep.subr.mxu0 0.0
    %296 = vmatpush1.msra.mxu0 0.0
    %297 = vmatprep.subr.mxu0 0.0
    %298 = vmatpush1.msra.mxu0 0.0
    %299 = vmatprep.subr.mxu0 0.0
    %300 = vmatpush1.msra.mxu0 0.0
    %301 = vmatprep.mubr.f32.mxu0 0.0
    %302 = vmatmul.mubr.f32.gmra.mrb[0].mxu0 %v80
    %v303 = vpop.f32.mrb[0].mxu0
    %v304 = vadd.f32 0.0, %v303
    %v305 = vpop.f32.mrb[0].mxu0
    %v306 = vadd.f32 0.0, %v305
    %307 = vmatprep.mubr.f32.mxu0 0.0
    %308 = vmatmul.mubr.f32.gmra.mrb[0].mxu0 %v81
    %v309 = vpop.f32.mrb[0].mxu0
    %v310 = vadd.f32 0.0, %v309
    %v311 = vpop.f32.mrb[0].mxu0
    %v312 = vadd.f32 0.0, %v311
    %313 = vmatprep.mubr.f32.mxu0 0.0
    %314 = vmatmul.mubr.f32.gmra.mrb[0].mxu0 %v82
    %v315 = vpop.f32.mrb[0].mxu0
    %v316 = vadd.f32 0.0, %v315
    %v317 = vpop.f32.mrb[0].mxu0
    %v318 = vadd.f32 0.0, %v317
    %319 = vmatprep.mubr.f32.mxu0 0.0
    %320 = vmatmul.mubr.f32.gmra.mrb[0].mxu0 %v83
    %v321 = vpop.f32.mrb[0].mxu0
    %v322 = vadd.f32 0.0, %v321
    %v323 = vpop.f32.mrb[0].mxu0
    %v324 = vadd.f32 0.0, %v323
    %325 = vdwg.mxu0
    %v326 = vtanh.pop %v183
    %v327 = vtanh.pop %v189
    %v328 = vtanh.pop %v195
    %v329 = vtanh.pop %v201
    %v330 = vtanh.pop %v304
    %v331 = vtanh.pop %v310
    %v332 = vtanh.pop %v316
    %v333 = vtanh.pop %v322
    %v334 = vld [vmem:[%s4] sm:$0x1]
    %v335 = vld [vmem:[%s4 + $0x1] sm:$0x1]
    %v336 = vld [vmem:[%s4 + $0x2] sm:$0x1]
    %v337 = vld [vmem:[%s4 + $0x3] sm:$0x1]
    %v338 = vlaneseq
    %v339 = vshrl.u32 %v338, 7
    %v340 = vsub.s32 0, %v339
    %v341 = vrot.slane %v334, %v340
    %v342 = vmul.f32 %v341, %v326
    %v343 = vmul.f32 %v341, %v327
    %v344 = vmul.f32 %v341, %v328
    %v345 = vmul.f32 %v341, %v329
    %v346 = vlaneseq
    %v347 = vshrl.u32 %v346, 7
    %v348 = vsub.s32 0, %v347
    %v349 = vrot.slane %v335, %v348
    %v350 = vadd.f32 %v342, %v349
    %v351 = vadd.f32 %v343, %v349
    %v352 = vadd.f32 %v344, %v349
    %v353 = vadd.f32 %v345, %v349
    %v354 = vlaneseq
    %v355 = vshrl.u32 %v354, 7
    %v356 = vsub.s32 0, %v355
    %v357 = vrot.slane %v336, %v356
    %v358 = vmul.f32 %v357, %v330
    %v359 = vmul.f32 %v357, %v331
    %v360 = vmul.f32 %v357, %v332
    %v361 = vmul.f32 %v357, %v333
    %v362 = vlaneseq
    %v363 = vshrl.u32 %v362, 7
    %v364 = vsub.s32 0, %v363
    %v365 = vrot.slane %v337, %v364
    %v366 = vadd.f32 %v358, %v365
    %v367 = vadd.f32 %v359, %v365
    %v368 = vadd.f32 %v360, %v365
    %v369 = vadd.f32 %v361, %v365
    %v370 = vadd.f32 %v185, %v306
    %v371 = vadd.f32 %v191, %v312
    %v372 = vadd.f32 %v197, %v318
    %v373 = vadd.f32 %v203, %v324
    %v374 = vxor.u32 %v370, 2147483648
    %v375 = vxor.u32 %v371, 2147483648
    %v376 = vxor.u32 %v372, 2147483648
    %v377 = vxor.u32 %v373, 2147483648
    %v378 = vmul.f32 %v374, 1.442695
    %v379 = vpow.pop %v378
    %v380 = vmul.f32 %v375, 1.442695
    %v381 = vpow.pop %v380
    %v382 = vmul.f32 %v376, 1.442695
    %v383 = vpow.pop %v382
    %v384 = vmul.f32 %v377, 1.442695
    %v385 = vpow.pop %v384
    %v386 = vadd.f32 %v379, 1.0
    %v387 = vadd.f32 %v381, 1.0
    %v388 = vadd.f32 %v383, 1.0
    %v389 = vadd.f32 %v385, 1.0
    %v390 = vrcp.pop %v386
    %v391 = vmul.f32 1.0, %v390
    %v392 = vrcp.pop %v387
    %v393 = vmul.f32 1.0, %v392
    %v394 = vrcp.pop %v388
    %v395 = vmul.f32 1.0, %v394
    %v396 = vrcp.pop %v389
    %v397 = vmul.f32 1.0, %v396
    %v398 = vsub.f32 %v350, %v366
    %v399 = vsub.f32 %v351, %v367
    %v400 = vsub.f32 %v352, %v368
    %v401 = vsub.f32 %v353, %v369
    %v402 = vmul.f32 %v391, %v398
    %v403 = vmul.f32 %v393, %v399
    %v404 = vmul.f32 %v395, %v400
    %v405 = vmul.f32 %v397, %v401
    %v406 = vadd.f32 %v366, %v402
    %v407 = vadd.f32 %v367, %v403
    %v408 = vadd.f32 %v368, %v404
    %v409 = vadd.f32 %v369, %v405
    %410 = vst [vmem:[#allocation10] sm:$0xff] %v406
    %411 = vst [vmem:[#allocation10 + $0x8] sm:$0xff] %v407
    %412 = vst [vmem:[#allocation10 + $0x10] sm:$0xff] %v408
    %413 = vst [vmem:[#allocation10 + $0x18] sm:$0xff] %v409
    // Predicated region
    $region38: #{tpu_custom_call.1} parent=1 // pred_check
      _
    $region39: #{tpu_custom_call.1} parent=1 // pred_check_branch
      %415 = sbr.rel (0) target = $region41
    $region40: #{tpu_custom_call.1} parent=1 // pred_region
      %s417 = ssub.s32 512, 512
      %418 = vsyncadd [#allocation4], %s417
      %s419 = sshll.u32 [#allocation10], 4
      %s420 = int_to_ptr.vmem [resolvable:$true] %s419
      %425 = dma.vmem_to_hbm [thread:$0]  %s420, 512, %s5, [#allocation4], 128, 128, 8
    $region41: #{tpu_custom_call.1} parent=1 // pred_fallthru
      _
    // Predicated region
    $region42: #{tpu_custom_call.1} parent=1 // pred_check
      _
    $region43: #{tpu_custom_call.1} parent=1 // pred_check_branch
      %427 = sbr.rel (0) target = $region45
    $region44: #{tpu_custom_call.1} parent=1 // pred_region
      %428 = dma.done [#allocation4], 512
    $region45: #{tpu_custom_call.1} parent=1 // pred_fallthru
      _
    %429 = vsyncpa [#allocation3], 1
    %430 = vsyncpa [#allocation6], 1
    %431 = vsyncpa [#allocation9], 1
    %432 = vsyncpa [#allocation4], 1

// kernel: tpu_custom_call.1
$region0: #{tpu_custom_call.1}
  #allocation0 [shape = 'u32[]', space=smem, size = 0x4, offset = 0x4, fixed_abs, tag = 'smem constant byte address 0x4 - core index']
  #allocation1 [shape = 'u32[144,128]{1,0:T(1,128)}', space=vmem, size = 0x12000, scoped, tag = 'internal scratch']
  %s0 = inlined_call_operand.hbm [shape: f32[32,128], index: 0, kind: input, shape index: {}]
  %s1 = inlined_call_operand.hbm [shape: f32[32,128], index: 1, kind: input, shape index: {}]
  %s2 = inlined_call_operand.hbm [shape: f32[128,256], index: 2, kind: input, shape index: {}]
  %s3 = inlined_call_operand.hbm [shape: f32[128,256], index: 3, kind: input, shape index: {}]
  %s4 = inlined_call_operand.vmem [shape: f32[8,128], index: 4, kind: input, shape index: {}]
  %s5 = inlined_call_operand.hbm [shape: f32[32,128], index: 5, kind: output, shape index: {}]
  %s6 = sld [smem:[#allocation0]]
  $region46: #{tpu_custom_call.1} parent=0
    _
  %s8 = ssub.s32 1, %s6
  %s9 = scalar_select 0, %s8, %s6
  $region1: #{tpu_custom_call.1} parent=0
    #allocation2 [shape = 'u8[16384]{0}', space=vmem, size = 0x4000, scoped, tag = 'input window, operand 0, single buffered']
    #allocation3 [shape = 's32[1]{0}', space=sflag, size = 0x4, scoped, tag = 'scoped memory for tpu_custom_call.1']
    #allocation4 [shape = 's32[1]{0}', space=sflag, size = 0x4, scoped, tag = 'scoped memory for tpu_custom_call.1']
    #allocation5 [shape = 'u8[16384]{0}', space=vmem, size = 0x4000, scoped, tag = 'input window, operand 1, single buffered']
    #allocation6 [shape = 's32[1]{0}', space=sflag, size = 0x4, scoped, tag = 'scoped memory for tpu_custom_call.1']
    #allocation7 [shape = 'u8[131072]{0}', space=vmem, size = 0x20000, scoped, tag = 'input window, operand 2, single buffered']
    #allocation8 [shape = 'u8[131072]{0}', space=vmem, size = 0x20000, scoped, tag = 'input window, operand 3, single buffered']
    #allocation9 [shape = 's32[1]{0}', space=sflag, size = 0x4, scoped, tag = 'scoped memory for tpu_custom_call.1']
    #allocation10 [shape = 'u8[16384]{0}', space=vmem, size = 0x4000, scoped, tag = 'output window, operand 0, single buffered']
    %10 = vsyncpa [#allocation3], 0
    %11 = vsyncpa [#allocation6], 0
    %12 = vsyncpa [#allocation9], 0
    %13 = vsyncpa [#allocation4], 0
    // Predicated region
    $region2: #{tpu_custom_call.1} parent=1 // pred_check
      _
    $region3: #{tpu_custom_call.1} parent=1 // pred_check_branch
      %15 = sbr.rel (0) target = $region5
    $region4: #{tpu_custom_call.1} parent=1 // pred_region
      %s17 = ssub.s32 512, 512
      %18 = vsyncadd [#allocation3], %s17
      %s19 = sshll.u32 [#allocation2], 4
      %s20 = int_to_ptr.vmem [resolvable:$true] %s19
      %25 = dma.hbm_to_vmem [thread:$0]  %s0, 512, %s20, [#allocation3], 128, 128, 8
    $region5: #{tpu_custom_call.1} parent=1 // pred_fallthru
      _
    // Predicated region
    $region6: #{tpu_custom_call.1} parent=1 // pred_check
      _
    $region7: #{tpu_custom_call.1} parent=1 // pred_check_branch
      %27 = sbr.rel (0) target = $region9
    $region8: #{tpu_custom_call.1} parent=1 // pred_region
      %s29 = ssub.s32 512, 512
      %30 = vsyncadd [#allocation6], %s29
      %s31 = sshll.u32 [#allocation5], 4
      %s32 = int_to_ptr.vmem [resolvable:$true] %s31
      %37 = dma.hbm_to_vmem [thread:$0]  %s1, 512, %s32, [#allocation6], 128, 128, 8
    $region9: #{tpu_custom_call.1} parent=1 // pred_fallthru
      _
    // Predicated region
    $region10: #{tpu_custom_call.1} parent=1 // pred_check
      _
    $region11: #{tpu_custom_call.1} parent=1 // pred_check_branch
      %39 = sbr.rel (0) target = $region13
    $region12: #{tpu_custom_call.1} parent=1 // pred_region
      %s41 = ssub.s32 4096, 4096
      %42 = vsyncadd [#allocation6], %s41
      %s43 = sshll.u32 [#allocation7], 4
      %s44 = int_to_ptr.vmem [resolvable:$true] %s43
      %49 = dma.hbm_to_vmem [thread:$0]  %s2, 4096, %s44, [#allocation6], 256, 256, 16
    $region13: #{tpu_custom_call.1} parent=1 // pred_fallthru
      _
    // Predicated region
    $region14: #{tpu_custom_call.1} parent=1 // pred_check
      _
    $region15: #{tpu_custom_call.1} parent=1 // pred_check_branch
      %51 = sbr.rel (0) target = $region17
    $region16: #{tpu_custom_call.1} parent=1 // pred_region
      %s53 = ssub.s32 4096, 4096
      %54 = vsyncadd [#allocation9], %s53
      %s55 = sshll.u32 [#allocation8], 4
      %s56 = int_to_ptr.vmem [resolvable:$true] %s55
      %61 = dma.hbm_to_vmem [thread:$0]  %s3, 4096, %s56, [#allocation9], 256, 256, 16
    $region17: #{tpu_custom_call.1} parent=1 // pred_fallthru
      _
    // Predicated region
    $region18: #{tpu_custom_call.1} parent=1 // pred_check
      _
    $region19: #{tpu_custom_call.1} parent=1 // pred_check_branch
      %63 = sbr.rel (0) target = $region21
    $region20: #{tpu_custom_call.1} parent=1 // pred_region
      _
    $region21: #{tpu_custom_call.1} parent=1 // pred_fallthru
      _
    // Predicated region
    $region22: #{tpu_custom_call.1} parent=1 // pred_check
      _
    $region23: #{tpu_custom_call.1} parent=1 // pred_check_branch
      %65 = sbr.rel (0) target = $region25
    $region24: #{tpu_custom_call.1} parent=1 // pred_region
      %66 = dma.done [#allocation3], 512
    $region25: #{tpu_custom_call.1} parent=1 // pred_fallthru
      _
    // Predicated region
    $region26: #{tpu_custom_call.1} parent=1 // pred_check
      _
    $region27: #{tpu_custom_call.1} parent=1 // pred_check_branch
      %68 = sbr.rel (0) target = $region29
    $region28: #{tpu_custom_call.1} parent=1 // pred_region
      %69 = dma.done [#allocation6], 512
    $region29: #{tpu_custom_call.1} parent=1 // pred_fallthru
      _
    // Predicated region
    $region30: #{tpu_custom_call.1} parent=1 // pred_check
      _
    $region31: #{tpu_custom_call.1} parent=1 // pred_check_branch
      %71 = sbr.rel (0) target = $region33
    $region32: #{tpu_custom_call.1} parent=1 // pred_region
      %72 = dma.done [#allocation6], 4096
    $region33: #{tpu_custom_call.1} parent=1 // pred_fallthru
      _
    // Predicated region
    $region34: #{tpu_custom_call.1} parent=1 // pred_check
      _
    $region35: #{tpu_custom_call.1} parent=1 // pred_check_branch
      %74 = sbr.rel (0) target = $region37
    $region36: #{tpu_custom_call.1} parent=1 // pred_region
      %75 = dma.done [#allocation9], 4096
    $region37: #{tpu_custom_call.1} parent=1 // pred_fallthru
      _
    %v76 = vld [vmem:[#allocation2] sm:$0xff]
    %v77 = vld [vmem:[#allocation2 + $0x8] sm:$0xff]
    %v78 = vld [vmem:[#allocation2 + $0x10] sm:$0xff]
    %v79 = vld [vmem:[#allocation2 + $0x18] sm:$0xff]
    %v80 = vld [vmem:[#allocation5] sm:$0xff]
    %v81 = vld [vmem:[#allocation5 + $0x8] sm:$0xff]
    %v82 = vld [vmem:[#allocation5 + $0x10] sm:$0xff]
    %v83 = vld [vmem:[#allocation5 + $0x18] sm:$0xff]
    %v84 = vld [vmem:[#allocation7] sm:$0xff]
    %v85 = vld [vmem:[#allocation7 + $0x8] sm:$0xff]
    %v86 = vld [vmem:[#allocation7 + $0x10] sm:$0xff]
    %v87 = vld [vmem:[#allocation7 + $0x18] sm:$0xff]
    %v88 = vld [vmem:[#allocation7 + $0x20] sm:$0xff]
    %v89 = vld [vmem:[#allocation7 + $0x28] sm:$0xff]
    %v90 = vld [vmem:[#allocation7 + $0x30] sm:$0xff]
    %v91 = vld [vmem:[#allocation7 + $0x38] sm:$0xff]
    %v92 = vld [vmem:[#allocation7 + $0x40] sm:$0xff]
    %v93 = vld [vmem:[#allocation7 + $0x48] sm:$0xff]
    %v94 = vld [vmem:[#allocation7 + $0x50] sm:$0xff]
    %v95 = vld [vmem:[#allocation7 + $0x58] sm:$0xff]
    %v96 = vld [vmem:[#allocation7 + $0x60] sm:$0xff]
    %v97 = vld [vmem:[#allocation7 + $0x68] sm:$0xff]
    %v98 = vld [vmem:[#allocation7 + $0x70] sm:$0xff]
    %v99 = vld [vmem:[#allocation7 + $0x78] sm:$0xff]
    %v100 = vld [vmem:[#allocation7 + $0x80] sm:$0xff]
    %v101 = vld [vmem:[#allocation7 + $0x88] sm:$0xff]
    %v102 = vld [vmem:[#allocation7 + $0x90] sm:$0xff]
    %v103 = vld [vmem:[#allocation7 + $0x98] sm:$0xff]
    %v104 = vld [vmem:[#allocation7 + $0xa0] sm:$0xff]
    %v105 = vld [vmem:[#allocation7 + $0xa8] sm:$0xff]
    %v106 = vld [vmem:[#allocation7 + $0xb0] sm:$0xff]
    %v107 = vld [vmem:[#allocation7 + $0xb8] sm:$0xff]
    %v108 = vld [vmem:[#allocation7 + $0xc0] sm:$0xff]
    %v109 = vld [vmem:[#allocation7 + $0xc8] sm:$0xff]
    %v110 = vld [vmem:[#allocation7 + $0xd0] sm:$0xff]
    %v111 = vld [vmem:[#allocation7 + $0xd8] sm:$0xff]
    %v112 = vld [vmem:[#allocation7 + $0xe0] sm:$0xff]
    %v113 = vld [vmem:[#allocation7 + $0xe8] sm:$0xff]
    %v114 = vld [vmem:[#allocation7 + $0xf0] sm:$0xff]
    %v115 = vld [vmem:[#allocation7 + $0xf8] sm:$0xff]
    %116 = vmatprep.subr.mxu0 %v85
    %117 = vmatpush1.msra.mxu0 %v84
    %118 = vmatprep.subr.mxu0 %v87
    %119 = vmatpush1.msra.mxu0 %v86
    %120 = vmatprep.subr.mxu0 %v89
    %121 = vmatpush1.msra.mxu0 %v88
    %122 = vmatprep.subr.mxu0 %v91
    %123 = vmatpush1.msra.mxu0 %v90
    %124 = vmatprep.subr.mxu0 %v93
    %125 = vmatpush1.msra.mxu0 %v92
    %126 = vmatprep.subr.mxu0 %v95
    %127 = vmatpush1.msra.mxu0 %v94
    %128 = vmatprep.subr.mxu0 %v97
    %129 = vmatpush1.msra.mxu0 %v96
    %130 = vmatprep.subr.mxu0 %v99
    %131 = vmatpush1.msra.mxu0 %v98
    %132 = vmatprep.subr.mxu0 %v101
    %133 = vmatpush1.msra.mxu0 %v100
    %134 = vmatprep.subr.mxu0 %v103
    %135 = vmatpush1.msra.mxu0 %v102
    %136 = vmatprep.subr.mxu0 %v105
    %137 = vmatpush1.msra.mxu0 %v104
    %138 = vmatprep.subr.mxu0 %v107
    %139 = vmatpush1.msra.mxu0 %v106
    %140 = vmatprep.subr.mxu0 %v109
    %141 = vmatpush1.msra.mxu0 %v108
    %142 = vmatprep.subr.mxu0 %v111
    %143 = vmatpush1.msra.mxu0 %v110
    %144 = vmatprep.subr.mxu0 %v113
    %145 = vmatpush1.msra.mxu0 %v112
    %146 = vmatprep.subr.mxu0 %v115
    %147 = vmatpush1.msra.mxu0 %v114
    %148 = vmatprep.subr.mxu0 0.0
    %149 = vmatpush1.msra.mxu0 0.0
    %150 = vmatprep.subr.mxu0 0.0
    %151 = vmatpush1.msra.mxu0 0.0
    %152 = vmatprep.subr.mxu0 0.0
    %153 = vmatpush1.msra.mxu0 0.0
    %154 = vmatprep.subr.mxu0 0.0
    %155 = vmatpush1.msra.mxu0 0.0
    %156 = vmatprep.subr.mxu0 0.0
    %157 = vmatpush1.msra.mxu0 0.0
    %158 = vmatprep.subr.mxu0 0.0
    %159 = vmatpush1.msra.mxu0 0.0
    %160 = vmatprep.subr.mxu0 0.0
    %161 = vmatpush1.msra.mxu0 0.0
    %162 = vmatprep.subr.mxu0 0.0
    %163 = vmatpush1.msra.mxu0 0.0
    %164 = vmatprep.subr.mxu0 0.0
    %165 = vmatpush1.msra.mxu0 0.0
    %166 = vmatprep.subr.mxu0 0.0
    %167 = vmatpush1.msra.mxu0 0.0
    %168 = vmatprep.subr.mxu0 0.0
    %169 = vmatpush1.msra.mxu0 0.0
    %170 = vmatprep.subr.mxu0 0.0
    %171 = vmatpush1.msra.mxu0 0.0
    %172 = vmatprep.subr.mxu0 0.0
    %173 = vmatpush1.msra.mxu0 0.0
    %174 = vmatprep.subr.mxu0 0.0
    %175 = vmatpush1.msra.mxu0 0.0
    %176 = vmatprep.subr.mxu0 0.0
    %177 = vmatpush1.msra.mxu0 0.0
    %178 = vmatprep.subr.mxu0 0.0
    %179 = vmatpush1.msra.mxu0 0.0
    %180 = vmatprep.mubr.f32.mxu0 0.0
    %181 = vmatmul.mubr.f32.gmra.mrb[0].mxu0 %v76
    %v182 = vpop.f32.mrb[0].mxu0
    %v183 = vadd.f32 0.0, %v182
    %v184 = vpop.f32.mrb[0].mxu0
    %v185 = vadd.f32 0.0, %v184
    %186 = vmatprep.mubr.f32.mxu0 0.0
    %187 = vmatmul.mubr.f32.gmra.mrb[0].mxu0 %v77
    %v188 = vpop.f32.mrb[0].mxu0
    %v189 = vadd.f32 0.0, %v188
    %v190 = vpop.f32.mrb[0].mxu0
    %v191 = vadd.f32 0.0, %v190
    %192 = vmatprep.mubr.f32.mxu0 0.0
    %193 = vmatmul.mubr.f32.gmra.mrb[0].mxu0 %v78
    %v194 = vpop.f32.mrb[0].mxu0
    %v195 = vadd.f32 0.0, %v194
    %v196 = vpop.f32.mrb[0].mxu0
    %v197 = vadd.f32 0.0, %v196
    %198 = vmatprep.mubr.f32.mxu0 0.0
    %199 = vmatmul.mubr.f32.gmra.mrb[0].mxu0 %v79
    %v200 = vpop.f32.mrb[0].mxu0
    %v201 = vadd.f32 0.0, %v200
    %v202 = vpop.f32.mrb[0].mxu0
    %v203 = vadd.f32 0.0, %v202
    %204 = vdwg.mxu0
    %v205 = vld [vmem:[#allocation8] sm:$0xff]
    %v206 = vld [vmem:[#allocation8 + $0x8] sm:$0xff]
    %v207 = vld [vmem:[#allocation8 + $0x10] sm:$0xff]
    %v208 = vld [vmem:[#allocation8 + $0x18] sm:$0xff]
    %v209 = vld [vmem:[#allocation8 + $0x20] sm:$0xff]
    %v210 = vld [vmem:[#allocation8 + $0x28] sm:$0xff]
    %v211 = vld [vmem:[#allocation8 + $0x30] sm:$0xff]
    %v212 = vld [vmem:[#allocation8 + $0x38] sm:$0xff]
    %v213 = vld [vmem:[#allocation8 + $0x40] sm:$0xff]
    %v214 = vld [vmem:[#allocation8 + $0x48] sm:$0xff]
    %v215 = vld [vmem:[#allocation8 + $0x50] sm:$0xff]
    %v216 = vld [vmem:[#allocation8 + $0x58] sm:$0xff]
    %v217 = vld [vmem:[#allocation8 + $0x60] sm:$0xff]
    %v218 = vld [vmem:[#allocation8 + $0x68] sm:$0xff]
    %v219 = vld [vmem:[#allocation8 + $0x70] sm:$0xff]
    %v220 = vld [vmem:[#allocation8 + $0x78] sm:$0xff]
    %v221 = vld [vmem:[#allocation8 + $0x80] sm:$0xff]
    %v222 = vld [vmem:[#allocation8 + $0x88] sm:$0xff]
    %v223 = vld [vmem:[#allocation8 + $0x90] sm:$0xff]
    %v224 = vld [vmem:[#allocation8 + $0x98] sm:$0xff]
    %v225 = vld [vmem:[#allocation8 + $0xa0] sm:$0xff]
    %v226 = vld [vmem:[#allocation8 + $0xa8] sm:$0xff]
    %v227 = vld [vmem:[#allocation8 + $0xb0] sm:$0xff]
    %v228 = vld [vmem:[#allocation8 + $0xb8] sm:$0xff]
    %v229 = vld [vmem:[#allocation8 + $0xc0] sm:$0xff]
    %v230 = vld [vmem:[#allocation8 + $0xc8] sm:$0xff]
    %v231 = vld [vmem:[#allocation8 + $0xd0] sm:$0xff]
    %v232 = vld [vmem:[#allocation8 + $0xd8] sm:$0xff]
    %v233 = vld [vmem:[#allocation8 + $0xe0] sm:$0xff]
    %v234 = vld [vmem:[#allocation8 + $0xe8] sm:$0xff]
    %v235 = vld [vmem:[#allocation8 + $0xf0] sm:$0xff]
    %v236 = vld [vmem:[#allocation8 + $0xf8] sm:$0xff]
    %237 = vmatprep.subr.mxu0 %v206
    %238 = vmatpush1.msra.mxu0 %v205
    %239 = vmatprep.subr.mxu0 %v208
    %240 = vmatpush1.msra.mxu0 %v207
    %241 = vmatprep.subr.mxu0 %v210
    %242 = vmatpush1.msra.mxu0 %v209
    %243 = vmatprep.subr.mxu0 %v212
    %244 = vmatpush1.msra.mxu0 %v211
    %245 = vmatprep.subr.mxu0 %v214
    %246 = vmatpush1.msra.mxu0 %v213
    %247 = vmatprep.subr.mxu0 %v216
    %248 = vmatpush1.msra.mxu0 %v215
    %249 = vmatprep.subr.mxu0 %v218
    %250 = vmatpush1.msra.mxu0 %v217
    %251 = vmatprep.subr.mxu0 %v220
    %252 = vmatpush1.msra.mxu0 %v219
    %253 = vmatprep.subr.mxu0 %v222
    %254 = vmatpush1.msra.mxu0 %v221
    %255 = vmatprep.subr.mxu0 %v224
    %256 = vmatpush1.msra.mxu0 %v223
    %257 = vmatprep.subr.mxu0 %v226
    %258 = vmatpush1.msra.mxu0 %v225
    %259 = vmatprep.subr.mxu0 %v228
    %260 = vmatpush1.msra.mxu0 %v227
    %261 = vmatprep.subr.mxu0 %v230
    %262 = vmatpush1.msra.mxu0 %v229
    %263 = vmatprep.subr.mxu0 %v232
    %264 = vmatpush1.msra.mxu0 %v231
    %265 = vmatprep.subr.mxu0 %v234
    %266 = vmatpush1.msra.mxu0 %v233
    %267 = vmatprep.subr.mxu0 %v236
    %268 = vmatpush1.msra.mxu0 %v235
    %269 = vmatprep.subr.mxu0 0.0
    %270 = vmatpush1.msra.mxu0 0.0
    %271 = vmatprep.subr.mxu0 0.0
    %272 = vmatpush1.msra.mxu0 0.0
    %273 = vmatprep.subr.mxu0 0.0
    %274 = vmatpush1.msra.mxu0 0.0
    %275 = vmatprep.subr.mxu0 0.0
    %276 = vmatpush1.msra.mxu0 0.0
    %277 = vmatprep.subr.mxu0 0.0
    %278 = vmatpush1.msra.mxu0 0.0
    %279 = vmatprep.subr.mxu0 0.0
    %280 = vmatpush1.msra.mxu0 0.0
    %281 = vmatprep.subr.mxu0 0.0
    %282 = vmatpush1.msra.mxu0 0.0
    %283 = vmatprep.subr.mxu0 0.0
    %284 = vmatpush1.msra.mxu0 0.0
    %285 = vmatprep.subr.mxu0 0.0
    %286 = vmatpush1.msra.mxu0 0.0
    %287 = vmatprep.subr.mxu0 0.0
    %288 = vmatpush1.msra.mxu0 0.0
    %289 = vmatprep.subr.mxu0 0.0
    %290 = vmatpush1.msra.mxu0 0.0
    %291 = vmatprep.subr.mxu0 0.0
    %292 = vmatpush1.msra.mxu0 0.0
    %293 = vmatprep.subr.mxu0 0.0
    %294 = vmatpush1.msra.mxu0 0.0
    %295 = vmatprep.subr.mxu0 0.0
    %296 = vmatpush1.msra.mxu0 0.0
    %297 = vmatprep.subr.mxu0 0.0
    %298 = vmatpush1.msra.mxu0 0.0
    %299 = vmatprep.subr.mxu0 0.0
    %300 = vmatpush1.msra.mxu0 0.0
    %301 = vmatprep.mubr.f32.mxu0 0.0
    %302 = vmatmul.mubr.f32.gmra.mrb[0].mxu0 %v80
    %v303 = vpop.f32.mrb[0].mxu0
    %v304 = vadd.f32 0.0, %v303
    %v305 = vpop.f32.mrb[0].mxu0
    %v306 = vadd.f32 0.0, %v305
    %307 = vmatprep.mubr.f32.mxu0 0.0
    %308 = vmatmul.mubr.f32.gmra.mrb[0].mxu0 %v81
    %v309 = vpop.f32.mrb[0].mxu0
    %v310 = vadd.f32 0.0, %v309
    %v311 = vpop.f32.mrb[0].mxu0
    %v312 = vadd.f32 0.0, %v311
    %313 = vmatprep.mubr.f32.mxu0 0.0
    %314 = vmatmul.mubr.f32.gmra.mrb[0].mxu0 %v82
    %v315 = vpop.f32.mrb[0].mxu0
    %v316 = vadd.f32 0.0, %v315
    %v317 = vpop.f32.mrb[0].mxu0
    %v318 = vadd.f32 0.0, %v317
    %319 = vmatprep.mubr.f32.mxu0 0.0
    %320 = vmatmul.mubr.f32.gmra.mrb[0].mxu0 %v83
    %v321 = vpop.f32.mrb[0].mxu0
    %v322 = vadd.f32 0.0, %v321
    %v323 = vpop.f32.mrb[0].mxu0
    %v324 = vadd.f32 0.0, %v323
    %325 = vdwg.mxu0
    %v326 = vtanh.pop %v183
    %v327 = vtanh.pop %v189
    %v328 = vtanh.pop %v195
    %v329 = vtanh.pop %v201
    %v330 = vtanh.pop %v304
    %v331 = vtanh.pop %v310
    %v332 = vtanh.pop %v316
    %v333 = vtanh.pop %v322
    %v334 = vld [vmem:[%s4] sm:$0x1]
    %v335 = vld [vmem:[%s4 + $0x1] sm:$0x1]
    %v336 = vld [vmem:[%s4 + $0x2] sm:$0x1]
    %v337 = vld [vmem:[%s4 + $0x3] sm:$0x1]
    %v338 = vlaneseq
    %v339 = vshrl.u32 %v338, 7
    %v340 = vsub.s32 0, %v339
    %v341 = vrot.slane %v334, %v340
    %v342 = vmul.f32 %v341, %v326
    %v343 = vmul.f32 %v341, %v327
    %v344 = vmul.f32 %v341, %v328
    %v345 = vmul.f32 %v341, %v329
    %v346 = vlaneseq
    %v347 = vshrl.u32 %v346, 7
    %v348 = vsub.s32 0, %v347
    %v349 = vrot.slane %v335, %v348
    %v350 = vadd.f32 %v342, %v349
    %v351 = vadd.f32 %v343, %v349
    %v352 = vadd.f32 %v344, %v349
    %v353 = vadd.f32 %v345, %v349
    %v354 = vlaneseq
    %v355 = vshrl.u32 %v354, 7
    %v356 = vsub.s32 0, %v355
    %v357 = vrot.slane %v336, %v356
    %v358 = vmul.f32 %v357, %v330
    %v359 = vmul.f32 %v357, %v331
    %v360 = vmul.f32 %v357, %v332
    %v361 = vmul.f32 %v357, %v333
    %v362 = vlaneseq
    %v363 = vshrl.u32 %v362, 7
    %v364 = vsub.s32 0, %v363
    %v365 = vrot.slane %v337, %v364
    %v366 = vadd.f32 %v358, %v365
    %v367 = vadd.f32 %v359, %v365
    %v368 = vadd.f32 %v360, %v365
    %v369 = vadd.f32 %v361, %v365
    %v370 = vadd.f32 %v185, %v306
    %v371 = vadd.f32 %v191, %v312
    %v372 = vadd.f32 %v197, %v318
    %v373 = vadd.f32 %v203, %v324
    %v374 = vxor.u32 %v370, 2147483648
    %v375 = vxor.u32 %v371, 2147483648
    %v376 = vxor.u32 %v372, 2147483648
    %v377 = vxor.u32 %v373, 2147483648
    %v378 = vmul.f32 %v374, 1.442695
    %v379 = vpow.pop %v378
    %v380 = vmul.f32 %v375, 1.442695
    %v381 = vpow.pop %v380
    %v382 = vmul.f32 %v376, 1.442695
    %v383 = vpow.pop %v382
    %v384 = vmul.f32 %v377, 1.442695
    %v385 = vpow.pop %v384
    %v386 = vadd.f32 %v379, 1.0
    %v387 = vadd.f32 %v381, 1.0
    %v388 = vadd.f32 %v383, 1.0
    %v389 = vadd.f32 %v385, 1.0
    %v390 = vrcp.pop %v386
    %v391 = vmul.f32 1.0, %v390
    %v392 = vrcp.pop %v387
    %v393 = vmul.f32 1.0, %v392
    %v394 = vrcp.pop %v388
    %v395 = vmul.f32 1.0, %v394
    %v396 = vrcp.pop %v389
    %v397 = vmul.f32 1.0, %v396
    %v398 = vsub.f32 %v350, %v366
    %v399 = vsub.f32 %v351, %v367
    %v400 = vsub.f32 %v352, %v368
    %v401 = vsub.f32 %v353, %v369
    %v402 = vmul.f32 %v391, %v398
    %v403 = vmul.f32 %v393, %v399
    %v404 = vmul.f32 %v395, %v400
    %v405 = vmul.f32 %v397, %v401
    %v406 = vadd.f32 %v366, %v402
    %v407 = vadd.f32 %v367, %v403
    %v408 = vadd.f32 %v368, %v404
    %v409 = vadd.f32 %v369, %v405
    %410 = vst [vmem:[#allocation10] sm:$0xff] %v406
    %411 = vst [vmem:[#allocation10 + $0x8] sm:$0xff] %v407
    %412 = vst [vmem:[#allocation10 + $0x10] sm:$0xff] %v408
    %413 = vst [vmem:[#allocation10 + $0x18] sm:$0xff] %v409
    // Predicated region
    $region38: #{tpu_custom_call.1} parent=1 // pred_check
      _
    $region39: #{tpu_custom_call.1} parent=1 // pred_check_branch
      %415 = sbr.rel (0) target = $region41
    $region40: #{tpu_custom_call.1} parent=1 // pred_region
      %s417 = ssub.s32 512, 512
      %418 = vsyncadd [#allocation4], %s417
      %s419 = sshll.u32 [#allocation10], 4
      %s420 = int_to_ptr.vmem [resolvable:$true] %s419
      %425 = dma.vmem_to_hbm [thread:$0]  %s420, 512, %s5, [#allocation4], 128, 128, 8
    $region41: #{tpu_custom_call.1} parent=1 // pred_fallthru
      _
    // Predicated region
    $region42: #{tpu_custom_call.1} parent=1 // pred_check
      _
    $region43: #{tpu_custom_call.1} parent=1 // pred_check_branch
      %427 = sbr.rel (0) target = $region45
    $region44: #{tpu_custom_call.1} parent=1 // pred_region
      %428 = dma.done [#allocation4], 512
    $region45: #{tpu_custom_call.1} parent=1 // pred_fallthru
      _
    %429 = vsyncpa [#allocation3], 1
    %430 = vsyncpa [#allocation6], 1
    %431 = vsyncpa [#allocation9], 1
    %432 = vsyncpa [#allocation4], 1

</llo_original>
